<compile_context>
chip_gen: v7x
topology: tpu7x:2x2x1
jax: 0.10.0
libtpu: 0.0.40
codegen_flags: <defaults>
</compile_context>

<pallas_src>
import jax
import jax.numpy as jnp
from jax.experimental import pallas as pl
from jax.experimental.pallas import tpu as pltpu


def _ffn_rows_kernel(x_ref, w1_ref, b1_ref, w2_ref, b2_ref, o_ref):
    """One row-tile (flattened batch*time) per grid step.

    x_ref  : (TILE, K*C_in) bf16   im2col rows
    w1_ref : (K*C_in, H)    bf16   conv weight, tap-major (resident, single-buffered)
    b1_ref : (1, H)         f32
    w2_ref : (H, C_out)     bf16   linear weight (resident, single-buffered)
    b2_ref : (1, C_out)     f32
    o_ref  : (TILE, C_out)
    """
    # Conv1d as a single MXU matmul over the K*C_in contraction (f32 accumulate).
    acc = jnp.dot(x_ref[...], w1_ref[...], preferred_element_type=jnp.float32)
    # Bias + ReLU in f32 on the VPU (v5e has no bf16 VPU path).
    h = jnp.maximum(acc + b1_ref[...], 0.0)
    # Dropout is identity at inference time.
    out = jnp.dot(h.astype(w2_ref.dtype), w2_ref[...],
                  preferred_element_type=jnp.float32) + b2_ref[...]
    # Single store per grid step.  (If C_out < 128 this is a masked vst; keep
    # in_chans lane-aligned in real models for dense stores.)
    o_ref[...] = out.astype(o_ref.dtype)


def conv1d_linear(x, w1, b1, w2, b2, kernel_size):
    """x: (B, T, in_chans) -> (B, T_out, in_chans), matching Conv1dLinear.forward.

    Padding is symmetric by (K-1)//2 like torch.nn.Conv1d, so T_out == T for odd
    kernel_size (and T-1 for even kernel_size, exactly like the PyTorch module).
    """
    B, T, C_in = x.shape
    K = int(kernel_size)
    H = w1.shape[0]       # hidden_chans (torch Conv1d weight: (H, C_in, K))
    C_out = w2.shape[0]   # in_chans     (torch Linear weight: (C_out, H))
    pad = (K - 1) // 2
    T_out = T + 2 * pad - (K - 1)
    KC = K * C_in
    out_dtype = x.dtype

    # ---- wrapper-side im2col, fused with the bf16 down-cast (one XLA fusion).
    xp = jnp.pad(x.astype(jnp.bfloat16), ((0, 0), (pad, pad), (0, 0)))
    if K == 1:
        cols = xp
    else:
        cols = jnp.concatenate([xp[:, k:k + T_out, :] for k in range(K)], axis=-1)
    rows = B * T_out
    x_rows = cols.reshape(rows, KC)

    # ---- one-time weight re-layout for in-kernel matmuls.
    #   conv (H, C_in, K) -> (K*C_in, H) tap-major (matches im2col column order)
    #   linear (C_out, H) -> (H, C_out)
    w1_flat = jnp.transpose(w1, (2, 1, 0)).reshape(KC, H).astype(jnp.bfloat16)
    w2_t = jnp.transpose(w2, (1, 0)).astype(jnp.bfloat16)
    b1_r = b1.reshape(1, H).astype(jnp.float32)
    b2_r = b2.reshape(1, C_out).astype(jnp.float32)

    # ---- generation-aware VMEM budget.
    try:
        vmem_cap = int(pltpu.get_tpu_info().vmem_capacity_bytes)
    except Exception:
        vmem_cap = 64 * 1024 * 1024          # conservative default (v7x-sized)
    vmem_limit = int(min(vmem_cap - (16 << 20), 110 << 20))  # ~110MiB v5e/v6e, ~48MiB v7x
    budget = vmem_limit - (8 << 20)

    out_isize = jnp.dtype(out_dtype).itemsize
    weight_bytes = (KC * H + H * C_out) * 2 + (H + C_out) * 4      # single-buffered
    per_row = (2 * KC * 2                    # bf16 input rows, double-buffered
               + 2 * C_out * out_isize       # output rows, double-buffered
               + 4 * H + 2 * H + 4 * C_out)  # f32 acc + bf16 h + f32 out temporaries

    # ---- row-tile selection:
    #   * target >= 512 MXU rows per step (v6e/v7x 256x256 MXU; v5e fine at >=256)
    #   * stay inside the VMEM budget
    #   * keep the grid >= 2 steps whenever possible (v7x TC sharding + pipelining)
    tile = 1024
    tile = min(tile, max(8, (budget - weight_bytes) // max(per_row, 1)))
    tile = min(tile, max(8, pl.cdiv(rows, 2)))
    tile = max(8, (tile // 8) * 8)           # sublane multiple
    grid = pl.cdiv(rows, tile)
    rows_pad = grid * tile
    if rows_pad != rows:                      # pad tail tile instead of shrinking it
        x_rows = jnp.pad(x_rows, ((0, rows_pad - rows), (0, 0)))

    cost = pl.CostEstimate(
        flops=2 * rows * (KC * H + H * C_out),
        transcendentals=0,
        bytes_accessed=rows * KC * 2 + weight_bytes + rows * C_out * out_isize)

    def _resident(shape):
        # Constant index_map + single buffer: fetched once, stays VMEM-resident.
        return pl.BlockSpec(shape, lambda i: (0, 0), pipeline_mode=pl.Buffered(1))

    out_rows = pl.pallas_call(
        _ffn_rows_kernel,
        out_shape=jax.ShapeDtypeStruct((rows_pad, C_out), out_dtype),
        grid=(grid,),
        in_specs=[
            pl.BlockSpec((tile, KC), lambda i: (i, 0)),
            _resident((KC, H)),
            _resident((1, H)),
            _resident((H, C_out)),
            _resident((1, C_out)),
        ],
        out_specs=pl.BlockSpec((tile, C_out), lambda i: (i, 0)),
        compiler_params=pltpu.CompilerParams(
            dimension_semantics=("parallel",),    # row tiles shard across 2 TCs on v7x
            vmem_limit_bytes=vmem_limit),
        cost_estimate=cost,
    )(x_rows, w1_flat, b1_r, w2_t, b2_r)

    return out_rows[:rows].reshape(B, T_out, C_out)


def reference(x, w1, b1, w2, b2, kernel_size):
    """Pure-JAX reference mirroring the PyTorch forward, with the same bf16
    rounding of matmul inputs (f32 accumulation) as the kernel."""
    K = kernel_size
    pad = (K - 1) // 2
    T_out = x.shape[1] + 2 * pad - (K - 1)
    xq = x.astype(jnp.bfloat16).astype(jnp.float32)
    w1q = w1.astype(jnp.bfloat16).astype(jnp.float32)
    w2q = w2.astype(jnp.bfloat16).astype(jnp.float32)
    xp = jnp.pad(xq, ((0, 0), (pad, pad), (0, 0)))
    h = sum(jnp.einsum("btc,hc->bth", xp[:, k:k + T_out, :], w1q[:, :, k])
            for k in range(K)) + b1
    h = jnp.maximum(h, 0.0).astype(jnp.bfloat16).astype(jnp.float32)
    return jnp.einsum("bth,oh->bto", h, w2q) + b2


if __name__ == "__main__":
    B, T = 2, 16
    in_chans, hidden_chans, kernel_size = 32, 64, 3
    dropout_rate = 0.0  # inference: dropout is identity

    key = jax.random.PRNGKey(0)
    kx, k1w, k1b, k2w, k2b = jax.random.split(key, 5)

    x = jax.random.normal(kx, (B, T, in_chans), dtype=jnp.float32)
    # Deterministic parameter init (shapes match torch.nn.Conv1d / Linear).
    w1 = jax.random.normal(k1w, (hidden_chans, in_chans, kernel_size), jnp.float32) * 0.1
    b1 = jax.random.normal(k1b, (hidden_chans,), jnp.float32) * 0.1
    w2 = jax.random.normal(k2w, (in_chans, hidden_chans), jnp.float32) * 0.1
    b2 = jax.random.normal(k2b, (in_chans,), jnp.float32) * 0.1

    out = conv1d_linear(x, w1, b1, w2, b2, kernel_size)
    out = jax.block_until_ready(out)

    ref = reference(x, w1, b1, w2, b2, kernel_size)
    assert out.shape == ref.shape == (B, T, in_chans), out.shape
    max_err = float(jnp.max(jnp.abs(out - ref)))
    assert jnp.allclose(out, ref, atol=1e-2, rtol=1e-2), max_err

    print("KERNEL_OK")
</pallas_src>

<mosaic_0001>
module attributes {stable_mosaic.version = 11 : i64} {
  func.func @_ffn_rows_kernel(%arg0: i32, %arg1: memref<16x96xbf16, #tpu.memory_space<vmem>>, %arg2: memref<96x64xbf16, #tpu.memory_space<vmem>>, %arg3: memref<1x64xf32, #tpu.memory_space<vmem>>, %arg4: memref<64x32xbf16, #tpu.memory_space<vmem>>, %arg5: memref<1x32xf32, #tpu.memory_space<vmem>>, %arg6: memref<16x32xf32, #tpu.memory_space<vmem>>) attributes {dimension_semantics = [#tpu.dimension_semantics<parallel>], iteration_bounds = array<i64: 2>, scalar_prefetch = 0 : i64, scratch_operands = 0 : i64, tpu.core_type = #tpu.core_type<tc>, window_params = [{transform_indices = @transform_0, window_bounds = array<i64: 16, 96>}, {pipeline_mode = #tpu.pipeline_mode<synchronous>, transform_indices = @transform_1, window_bounds = array<i64: 96, 64>}, {pipeline_mode = #tpu.pipeline_mode<synchronous>, transform_indices = @transform_2, window_bounds = array<i64: 1, 64>}, {pipeline_mode = #tpu.pipeline_mode<synchronous>, transform_indices = @transform_3, window_bounds = array<i64: 64, 32>}, {pipeline_mode = #tpu.pipeline_mode<synchronous>, transform_indices = @transform_4, window_bounds = array<i64: 1, 32>}, {transform_indices = @transform_5, window_bounds = array<i64: 16, 32>}]} {
    %c0 = arith.constant 0 : index
    %c0_0 = arith.constant 0 : index
    %0 = vector.load %arg1[%c0, %c0_0] : memref<16x96xbf16, #tpu.memory_space<vmem>>, vector<16x96xbf16>
    %c0_1 = arith.constant 0 : index
    %c0_2 = arith.constant 0 : index
    %1 = vector.load %arg2[%c0_1, %c0_2] : memref<96x64xbf16, #tpu.memory_space<vmem>>, vector<96x64xbf16>
    %cst = arith.constant dense<0.000000e+00> : vector<16x64xf32>
    %2 = tpu.matmul %0, %1, %cst {dimension_numbers = #tpu.dot_dimension_numbers<[1], [0], [0], [1], [0, 0, 1, 1], [], []>} : vector<16x96xbf16>, vector<96x64xbf16>, vector<16x64xf32> -> vector<16x64xf32>
    %c0_3 = arith.constant 0 : index
    %c0_4 = arith.constant 0 : index
    %3 = vector.load %arg3[%c0_3, %c0_4] : memref<1x64xf32, #tpu.memory_space<vmem>>, vector<1x64xf32>
    %4 = vector.broadcast %3 : vector<1x64xf32> to vector<16x64xf32>
    %5 = arith.addf %2, %4 : vector<16x64xf32>
    %cst_5 = arith.constant 0.000000e+00 : f32
    %6 = vector.broadcast %cst_5 : f32 to vector<16x64xf32>
    %7 = arith.maximumf %5, %6 : vector<16x64xf32>
    %8 = arith.truncf %7 : vector<16x64xf32> to vector<16x64xbf16>
    %c0_6 = arith.constant 0 : index
    %c0_7 = arith.constant 0 : index
    %9 = vector.load %arg4[%c0_6, %c0_7] : memref<64x32xbf16, #tpu.memory_space<vmem>>, vector<64x32xbf16>
    %cst_8 = arith.constant dense<0.000000e+00> : vector<16x32xf32>
    %10 = tpu.matmul %8, %9, %cst_8 {dimension_numbers = #tpu.dot_dimension_numbers<[1], [0], [0], [1], [0, 0, 1, 1], [], []>} : vector<16x64xbf16>, vector<64x32xbf16>, vector<16x32xf32> -> vector<16x32xf32>
    %c0_9 = arith.constant 0 : index
    %c0_10 = arith.constant 0 : index
    %11 = vector.load %arg5[%c0_9, %c0_10] : memref<1x32xf32, #tpu.memory_space<vmem>>, vector<1x32xf32>
    %12 = vector.broadcast %11 : vector<1x32xf32> to vector<16x32xf32>
    %13 = arith.addf %10, %12 : vector<16x32xf32>
    %c0_11 = arith.constant 0 : index
    %c0_12 = arith.constant 0 : index
    %14 = vector.load %arg6[%c0_11, %c0_12] : memref<16x32xf32, #tpu.memory_space<vmem>>, vector<16x32xf32>
    tpu.vector_store %arg6[%c0_11, %c0_12], %13 {strides = array<i32>} : memref<16x32xf32, #tpu.memory_space<vmem>>, vector<16x32xf32>,
    return
  }
  func.func @transform_0(%arg0: i32) -> (i32, i32) {
    %c0_i32 = arith.constant 0 : i32
    %c0_i32_0 = arith.constant 0 : i32
    return %arg0, %c0_i32 : i32, i32
  }
  func.func @transform_1(%arg0: i32) -> (i32, i32) {
    %c0_i32 = arith.constant 0 : i32
    %c0_i32_0 = arith.constant 0 : i32
    %c0_i32_1 = arith.constant 0 : i32
    return %c0_i32, %c0_i32_0 : i32, i32
  }
  func.func @transform_2(%arg0: i32) -> (i32, i32) {
    %c0_i32 = arith.constant 0 : i32
    %c0_i32_0 = arith.constant 0 : i32
    %c0_i32_1 = arith.constant 0 : i32
    return %c0_i32, %c0_i32_0 : i32, i32
  }
  func.func @transform_3(%arg0: i32) -> (i32, i32) {
    %c0_i32 = arith.constant 0 : i32
    %c0_i32_0 = arith.constant 0 : i32
    %c0_i32_1 = arith.constant 0 : i32
    return %c0_i32, %c0_i32_0 : i32, i32
  }
  func.func @transform_4(%arg0: i32) -> (i32, i32) {
    %c0_i32 = arith.constant 0 : i32
    %c0_i32_0 = arith.constant 0 : i32
    %c0_i32_1 = arith.constant 0 : i32
    return %c0_i32, %c0_i32_0 : i32, i32
  }
  func.func @transform_5(%arg0: i32) -> (i32, i32) {
    %c0_i32 = arith.constant 0 : i32
    %c0_i32_0 = arith.constant 0 : i32
    return %arg0, %c0_i32 : i32, i32
  }
}

</mosaic_0001>

<llo_original>
// kernel: tpu_custom_call.1
$region0: #{tpu_custom_call.1}
  #allocation0 [shape = 'u32[]', space=smem, size = 0x4, offset = 0x4, fixed_abs, tag = 'smem constant byte address 0x4 - core index']
  #allocation1 [shape = 'u32[144,128]{1,0:T(1,128)}', space=vmem, size = 0x12000, scoped, tag = 'internal scratch']
  %s0 = inlined_call_operand.vmem [shape: bf16[32,96], index: 0, kind: input, shape index: {}]
  %s1 = inlined_call_operand.vmem [shape: bf16[96,64], index: 1, kind: input, shape index: {}]
  %s2 = inlined_call_operand.vmem [shape: f32[1,64], index: 2, kind: input, shape index: {}]
  %s3 = inlined_call_operand.vmem [shape: bf16[64,32], index: 3, kind: input, shape index: {}]
  %s4 = inlined_call_operand.vmem [shape: f32[1,32], index: 4, kind: input, shape index: {}]
  %s5 = inlined_call_operand.hbm [shape: f32[32,32], index: 5, kind: output, shape index: {}]
  %s6 = sld [smem:[#allocation0]]
  $region53: #{tpu_custom_call.1} parent=0
    _
  %s8 = ssub.s32 1, %s6
  %s9 = scalar_select 0, %s8, %s6
  $region1: #{tpu_custom_call.1} parent=0
    #allocation2 [shape = 'u8[16384]{0}', space=vmem, size = 0x4000, scoped, tag = 'output window, operand 0']
    #allocation3 [shape = 's32[2]{0}', space=sflag, size = 0x8, scoped, tag = 'scoped memory for tpu_custom_call.1']
    %10 = vsyncpa [#allocation3], 0
    %s11 = scalar_lea.sflag [#allocation3], 1
    %12 = vsyncpa %s11, 0
    loop: start=0, step=1, limit=4
    $region2: #{tpu_custom_call.1} parent=1 // loop_pre_header
      _
    $region3: #{tpu_custom_call.1} parent=1 // loop_header
      %s14 = sphi 0, %s18
      %p15 = scmp.ge.s32.totalorder %s14, 4
      %s24 = sphi 0, %s26
      %s27 = sphi 0, %s24
      %s28 = sphi 0, %s27
      %s44 = sphi 0, %s28
      %s48 = sphi 0, %s48
      %s50 = sphi 0, %s48
      %s51 = sphi 0, %s50
      %s65 = sphi 0, %s51
      %s69 = sphi 0, %s69
      %s71 = sphi 0, %s69
      %s72 = sphi 0, %s71
      %s86 = sphi 0, %s72
      %s90 = sphi 0, %s90
      %s92 = sphi 0, %s90
      %s93 = sphi 0, %s92
      %s107 = sphi 0, %s93
      %s111 = sphi 0, %s111
      %s113 = sphi 0, %s111
      %s114 = sphi 0, %s113
      %s128 = sphi 0, %s114
      %s134 = sphi 0, %s136
      %s137 = sphi 0, %s134
      %s138 = sphi 0, %s137
      %s154 = sphi 0, %s138
    $region4: #{tpu_custom_call.1} parent=1 // loop_header_branch
      %17 = sbr.rel (%p15) target = $region8
    $region5: #{tpu_custom_call.1} parent=1 // loop_body
      %s19 = ssub.s32 %s14, 1
      %s20 = ssub.s32 %s14, 2
      %s21 = sadd.s32 %s14, 1
      %s22 = ssub.s32 %s14, %s21
      %p23 = scmp.eq.s32.totalorder %s22, 0
      %s25 = sadd.s32 %s24, 1
      %s26 = scalar_select %p23, %s24, %s25
      %p29 = pneg %p23
      %p30 = scmp.eq.s32.totalorder %s14, 1
      %p31 = por %p29, %p30
      %p32 = scmp.ne.s32.totalorder %s24, %s27
      %p33 = scmp.eq.s32.totalorder %s14, 0
      %p34 = por %p32, %p33
      %p35 = scmp.ne.s32.totalorder %s24, %s27
      %p36 = scmp.eq.s32.totalorder %s19, 1
      %p37 = por %p35, %p36
      %p38 = scmp.ne.s32.totalorder %s27, %s28
      %p39 = scmp.eq.s32.totalorder %s19, 0
      %p40 = por %p38, %p39
      %p41 = scmp.ne.s32.totalorder %s27, %s28
      %p42 = scmp.eq.s32.totalorder %s20, 1
      %p43 = por %p41, %p42
      %p45 = scmp.ne.s32.totalorder %s28, %s44
      %p46 = scmp.eq.s32.totalorder %s20, 0
      %p47 = por %p45, %p46
      %s49 = sadd.s32 %s48, 1
      %p52 = scmp.eq.s32.totalorder %s14, 1
      %p53 = scmp.ne.s32.totalorder %s48, %s50
      %p54 = scmp.eq.s32.totalorder %s14, 0
      %p55 = por %p53, %p54
      %p56 = scmp.ne.s32.totalorder %s48, %s50
      %p57 = scmp.eq.s32.totalorder %s19, 1
      %p58 = por %p56, %p57
      %p59 = scmp.ne.s32.totalorder %s50, %s51
      %p60 = scmp.eq.s32.totalorder %s19, 0
      %p61 = por %p59, %p60
      %p62 = scmp.ne.s32.totalorder %s50, %s51
      %p63 = scmp.eq.s32.totalorder %s20, 1
      %p64 = por %p62, %p63
      %p66 = scmp.ne.s32.totalorder %s51, %s65
      %p67 = scmp.eq.s32.totalorder %s20, 0
      %p68 = por %p66, %p67
      %s70 = sadd.s32 %s69, 1
      %p73 = scmp.eq.s32.totalorder %s14, 1
      %p74 = scmp.ne.s32.totalorder %s69, %s71
      %p75 = scmp.eq.s32.totalorder %s14, 0
      %p76 = por %p74, %p75
      %p77 = scmp.ne.s32.totalorder %s69, %s71
      %p78 = scmp.eq.s32.totalorder %s19, 1
      %p79 = por %p77, %p78
      %p80 = scmp.ne.s32.totalorder %s71, %s72
      %p81 = scmp.eq.s32.totalorder %s19, 0
      %p82 = por %p80, %p81
      %p83 = scmp.ne.s32.totalorder %s71, %s72
      %p84 = scmp.eq.s32.totalorder %s20, 1
      %p85 = por %p83, %p84
      %p87 = scmp.ne.s32.totalorder %s72, %s86
      %p88 = scmp.eq.s32.totalorder %s20, 0
      %p89 = por %p87, %p88
      %s91 = sadd.s32 %s90, 1
      %p94 = scmp.eq.s32.totalorder %s14, 1
      %p95 = scmp.ne.s32.totalorder %s90, %s92
      %p96 = scmp.eq.s32.totalorder %s14, 0
      %p97 = por %p95, %p96
      %p98 = scmp.ne.s32.totalorder %s90, %s92
      %p99 = scmp.eq.s32.totalorder %s19, 1
      %p100 = por %p98, %p99
      %p101 = scmp.ne.s32.totalorder %s92, %s93
      %p102 = scmp.eq.s32.totalorder %s19, 0
      %p103 = por %p101, %p102
      %p104 = scmp.ne.s32.totalorder %s92, %s93
      %p105 = scmp.eq.s32.totalorder %s20, 1
      %p106 = por %p104, %p105
      %p108 = scmp.ne.s32.totalorder %s93, %s107
      %p109 = scmp.eq.s32.totalorder %s20, 0
      %p110 = por %p108, %p109
      %s112 = sadd.s32 %s111, 1
      %p115 = scmp.eq.s32.totalorder %s14, 1
      %p116 = scmp.ne.s32.totalorder %s111, %s113
      %p117 = scmp.eq.s32.totalorder %s14, 0
      %p118 = por %p116, %p117
      %p119 = scmp.ne.s32.totalorder %s111, %s113
      %p120 = scmp.eq.s32.totalorder %s19, 1
      %p121 = por %p119, %p120
      %p122 = scmp.ne.s32.totalorder %s113, %s114
      %p123 = scmp.eq.s32.totalorder %s19, 0
      %p124 = por %p122, %p123
      %p125 = scmp.ne.s32.totalorder %s113, %s114
      %p126 = scmp.eq.s32.totalorder %s20, 1
      %p127 = por %p125, %p126
      %p129 = scmp.ne.s32.totalorder %s114, %s128
      %p130 = scmp.eq.s32.totalorder %s20, 0
      %p131 = por %p129, %p130
      %s132 = ssub.s32 %s14, %s21
      %p133 = scmp.eq.s32.totalorder %s132, 0
      %s135 = sadd.s32 %s134, 1
      %s136 = scalar_select %p133, %s134, %s135
      %p139 = pneg %p133
      %p140 = scmp.eq.s32.totalorder %s14, 1
      %p141 = por %p139, %p140
      %p142 = scmp.ne.s32.totalorder %s134, %s137
      %p143 = scmp.eq.s32.totalorder %s14, 0
      %p144 = por %p142, %p143
      %p145 = scmp.ne.s32.totalorder %s134, %s137
      %p146 = scmp.eq.s32.totalorder %s19, 1
      %p147 = por %p145, %p146
      %p148 = scmp.ne.s32.totalorder %s137, %s138
      %p149 = scmp.eq.s32.totalorder %s19, 0
      %p150 = por %p148, %p149
      %p151 = scmp.ne.s32.totalorder %s137, %s138
      %p152 = scmp.eq.s32.totalorder %s20, 1
      %p153 = por %p151, %p152
      %p155 = scmp.ne.s32.totalorder %s138, %s154
      %p156 = scmp.eq.s32.totalorder %s20, 0
      %p157 = por %p155, %p156
      %p158 = scmp.le.s32.totalorder 1, %s14
      %p159 = scmp.lt.s32.totalorder %s14, 3
      %p160 = pnand %p158, %p159
      %p161 = pneg %p160
      // Predicated region
      $region9: #{tpu_custom_call.1} parent=5 // pred_check
        _
      $region10: #{tpu_custom_call.1} parent=5 // pred_check_branch
        %163 = sbr.rel (%p160) target = $region12
      $region11: #{tpu_custom_call.1} parent=5 // pred_region
        %s164 = ssub.s32 %s14, 1
        // Predicated region
        $region13: #{tpu_custom_call.1} parent=11 // pred_check
          %p165 = pneg %p61
        $region14: #{tpu_custom_call.1} parent=11 // pred_check_branch
          %167 = sbr.rel (%p165) target = $region16
        $region15: #{tpu_custom_call.1} parent=11 // pred_region
          _
        $region16: #{tpu_custom_call.1} parent=11 // pred_fallthru
          _
        // Predicated region
        $region17: #{tpu_custom_call.1} parent=11 // pred_check
          %p168 = pneg %p82
        $region18: #{tpu_custom_call.1} parent=11 // pred_check_branch
          %170 = sbr.rel (%p168) target = $region20
        $region19: #{tpu_custom_call.1} parent=11 // pred_region
          _
        $region20: #{tpu_custom_call.1} parent=11 // pred_fallthru
          _
        // Predicated region
        $region21: #{tpu_custom_call.1} parent=11 // pred_check
          %p171 = pneg %p103
        $region22: #{tpu_custom_call.1} parent=11 // pred_check_branch
          %173 = sbr.rel (%p171) target = $region24
        $region23: #{tpu_custom_call.1} parent=11 // pred_region
          _
        $region24: #{tpu_custom_call.1} parent=11 // pred_fallthru
          _
        // Predicated region
        $region25: #{tpu_custom_call.1} parent=11 // pred_check
          %p174 = pneg %p124
        $region26: #{tpu_custom_call.1} parent=11 // pred_check_branch
          %176 = sbr.rel (%p174) target = $region28
        $region27: #{tpu_custom_call.1} parent=11 // pred_region
          _
        $region28: #{tpu_custom_call.1} parent=11 // pred_fallthru
          _
      $region12: #{tpu_custom_call.1} parent=5 // pred_fallthru
        _
      %p177 = scmp.lt.s32.totalorder %s14, 2
      // Predicated region
      $region29: #{tpu_custom_call.1} parent=5 // pred_check
        %p178 = pneg %p177
      $region30: #{tpu_custom_call.1} parent=5 // pred_check_branch
        %180 = sbr.rel (%p178) target = $region32
      $region31: #{tpu_custom_call.1} parent=5 // pred_region
        // Predicated region
        $region33: #{tpu_custom_call.1} parent=31 // pred_check
          %p181 = pneg %p34
        $region34: #{tpu_custom_call.1} parent=31 // pred_check_branch
          %183 = sbr.rel (%p181) target = $region36
        $region35: #{tpu_custom_call.1} parent=31 // pred_region
          %s184 = smul.u32 2, %s14
          %p185 = scmp.lt.s32.totalorder %s184, 3
          %s186 = scalar_select %p185, %s184, 3
          %s187 = smul.addr %s186, 4
          %s188 = scalar_lea.vmem %s0, %s187
          %s189 = smul.u32 2, %s14
        $region36: #{tpu_custom_call.1} parent=31 // pred_fallthru
          _
      $region32: #{tpu_custom_call.1} parent=5 // pred_fallthru
        _
      %p190 = scmp.le.s32.totalorder 1, %s14
      %p191 = scmp.lt.s32.totalorder %s14, 3
      %p192 = pnand %p190, %p191
      %p193 = pneg %p192
      // Predicated region
      $region37: #{tpu_custom_call.1} parent=5 // pred_check
        _
      $region38: #{tpu_custom_call.1} parent=5 // pred_check_branch
        %195 = sbr.rel (%p192) target = $region40
      $region39: #{tpu_custom_call.1} parent=5 // pred_region
        %s196 = ssub.s32 %s14, 1
        %s197 = smul.u32 2, %s19
        %p198 = scmp.lt.s32.totalorder %s197, 3
        %s199 = scalar_select %p198, %s197, 3
        %s200 = smul.addr %s199, 4
        %s201 = scalar_lea.vmem %s0, %s200
        %p202 = pneg %p40
        %p203 = pneg %p37
        %p204 = pneg %p61
        %p205 = pneg %p58
        %p206 = pneg %p82
        %p207 = pneg %p79
        %p208 = pneg %p103
        %p209 = pneg %p100
        %p210 = pneg %p124
        %p211 = pneg %p121
        %p212 = pneg %p150
        %p213 = pneg %p147
        %s214 = sand.u32 %s137, 1
        %s215 = scalar_lea.sflag [#allocation3], %s214
        %s216 = sand.u32 %s137, 1
        %s217 = smul.addr %s216, 16
        %s218 = scalar_lea.vmem [#allocation2], %s217
        %s219 = smul.u32 2, %s19
        %p220 = scmp.lt.s32.totalorder %s219, 3
        %s221 = scalar_select %p220, %s219, 3
        %s222 = smul.addr %s221, 4
        %s223 = scalar_lea.vmem %s0, %s222
        %s224 = smul.u32 2, %s19
        %s225 = smul.u32 2, %s19
        %v227 = vld [vmem:[%s223] sm:$0xf]
        %v228 = vld [vmem:[%s223 + $0x4] sm:$0xf]
        %v229 = vld [vmem:[%s1] sm:$0xf]
        %v230 = vld [vmem:[%s1 + $0x4] sm:$0xf]
        %v231 = vld [vmem:[%s1 + $0x8] sm:$0xf]
        %v232 = vld [vmem:[%s1 + $0xc] sm:$0xf]
        %v233 = vld [vmem:[%s1 + $0x10] sm:$0xf]
        %v234 = vld [vmem:[%s1 + $0x14] sm:$0xf]
        %v235 = vld [vmem:[%s1 + $0x18] sm:$0xf]
        %v236 = vld [vmem:[%s1 + $0x1c] sm:$0xf]
        %v237 = vld [vmem:[%s1 + $0x20] sm:$0xf]
        %v238 = vld [vmem:[%s1 + $0x24] sm:$0xf]
        %v239 = vld [vmem:[%s1 + $0x28] sm:$0xf]
        %v240 = vld [vmem:[%s1 + $0x2c] sm:$0xf]
        %v241 = vld [vmem:[%s2] sm:$0x1]
        %v243 = vlaneseq
        %v244 = vshrl.u32 %v243, 7
        %v245 = vsub.s32 0, %v244
        %v246 = vrot.slane %v241, %v245
        %v250 = vunpack.c.l.b16 %v227
        %v251 = vunpack.c.l.b16 %v228
        %v252 = vpack.c.b16 %v251, %v250
        %v265 = vunpack.c.l.b16 %v229
        %v266 = vunpack.c.l.b16 %v230
        %v267 = vunpack.c.l.b16 %v231
        %v268 = vunpack.c.l.b16 %v232
        %v269 = vunpack.c.l.b16 %v233
        %v270 = vunpack.c.l.b16 %v234
        %v271 = vunpack.c.l.b16 %v235
        %v272 = vunpack.c.l.b16 %v236
        %v273 = vunpack.c.l.b16 %v237
        %v274 = vunpack.c.l.b16 %v238
        %v275 = vunpack.c.l.b16 %v239
        %v276 = vunpack.c.l.b16 %v240
        %v277 = vpack.c.b16 %v266, %v265
        %v278 = vpack.c.b16 %v268, %v267
        %v279 = vpack.c.b16 %v270, %v269
        %v280 = vpack.c.b16 %v272, %v271
        %v281 = vpack.c.b16 %v274, %v273
        %v282 = vpack.c.b16 %v276, %v275
        %vm289 = vcmask 785408
        %v291 = vsel %vm289, %v252, 0
        %293 = vmatprep.subr.bf16.mxu0 0
        %294 = vmatpush1.bf16.msra.mxu0 %v277
        %295 = vmatprep.subr.bf16.mxu0 0
        %296 = vmatpush1.bf16.msra.mxu0 %v278
        %297 = vmatprep.subr.bf16.mxu0 0
        %298 = vmatpush1.bf16.msra.mxu0 %v279
        %299 = vmatprep.subr.bf16.mxu0 0
        %300 = vmatpush1.bf16.msra.mxu0 %v280
        %301 = vmatprep.subr.bf16.mxu0 0
        %302 = vmatpush1.bf16.msra.mxu0 %v281
        %303 = vmatprep.subr.bf16.mxu0 0
        %304 = vmatpush1.bf16.msra.mxu0 %v282
        %305 = vmatprep.subr.bf16.mxu0 0
        %306 = vmatpush1.bf16.msra.mxu0 0
        %307 = vmatprep.subr.bf16.mxu0 0
        %308 = vmatpush1.bf16.msra.mxu0 0
        %309 = vmatprep.subr.bf16.mxu0 0
        %310 = vmatpush1.bf16.msra.mxu0 0
        %311 = vmatprep.subr.bf16.mxu0 0
        %312 = vmatpush1.bf16.msra.mxu0 0
        %313 = vmatprep.subr.bf16.mxu0 0
        %314 = vmatpush1.bf16.msra.mxu0 0
        %315 = vmatprep.subr.bf16.mxu0 0
        %316 = vmatpush1.bf16.msra.mxu0 0
        %317 = vmatprep.subr.bf16.mxu0 0
        %318 = vmatpush1.bf16.msra.mxu0 0
        %319 = vmatprep.subr.bf16.mxu0 0
        %320 = vmatpush1.bf16.msra.mxu0 0
        %321 = vmatprep.subr.bf16.mxu0 0
        %322 = vmatpush1.bf16.msra.mxu0 0
        %323 = vmatprep.subr.bf16.mxu0 0
        %324 = vmatpush1.bf16.msra.mxu0 0
        %325 = vmatprep.mubr.bf16.mxu0 0
        %326 = vmatmul.mubr.bf16.gmra.mrb[0].mxu0 %v291
        %v327 = vpop.f32.mrb[0].mxu0
        %v328 = vadd.f32 %v246, %v327
        %v329 = vpop.f32.mrb[0].mxu0
        %v330 = vpop.f32.mrb[0].mxu0
        %v331 = vadd.f32 %v246, %v330
        %v332 = vpop.f32.mrb[0].mxu0
        %333 = vdwg.mxu0
        %v334 = vmax.f32 %v328, 0.0
        %v335 = vmax.f32 %v331, 0.0
        %v336 = vpack.c.bf16 %v335, %v334
        %v337 = vld [vmem:[%s3] sm:$0xf]
        %v338 = vld [vmem:[%s3 + $0x4] sm:$0xf]
        %v339 = vld [vmem:[%s3 + $0x8] sm:$0xf]
        %v340 = vld [vmem:[%s3 + $0xc] sm:$0xf]
        %v341 = vld [vmem:[%s3 + $0x10] sm:$0xf]
        %v342 = vld [vmem:[%s3 + $0x14] sm:$0xf]
        %v343 = vld [vmem:[%s3 + $0x18] sm:$0xf]
        %v344 = vld [vmem:[%s3 + $0x1c] sm:$0xf]
        %v345 = vld [vmem:[%s4] sm:$0x1]
        %v347 = vlaneseq
        %v348 = vshrl.u32 %v347, 7
        %v349 = vsub.s32 0, %v348
        %v350 = vrot.slane %v345, %v349
        %v360 = vunpack.c.l.b16 %v337
        %v361 = vunpack.c.l.b16 %v338
        %v362 = vunpack.c.l.b16 %v339
        %v363 = vunpack.c.l.b16 %v340
        %v364 = vunpack.c.l.b16 %v341
        %v365 = vunpack.c.l.b16 %v342
        %v366 = vunpack.c.l.b16 %v343
        %v367 = vunpack.c.l.b16 %v344
        %v368 = vpack.c.b16 %v361, %v360
        %v369 = vpack.c.b16 %v363, %v362
        %v370 = vpack.c.b16 %v365, %v364
        %v371 = vpack.c.b16 %v367, %v366
        %vm376 = vcmask 523264
        %v378 = vsel %vm376, %v336, 0
        %380 = vmatprep.subr.bf16.mxu0 0
        %381 = vmatpush1.bf16.msra.mxu0 %v368
        %382 = vmatprep.subr.bf16.mxu0 0
        %383 = vmatpush1.bf16.msra.mxu0 %v369
        %384 = vmatprep.subr.bf16.mxu0 0
        %385 = vmatpush1.bf16.msra.mxu0 %v370
        %386 = vmatprep.subr.bf16.mxu0 0
        %387 = vmatpush1.bf16.msra.mxu0 %v371
        %388 = vmatprep.subr.bf16.mxu0 0
        %389 = vmatpush1.bf16.msra.mxu0 0
        %390 = vmatprep.subr.bf16.mxu0 0
        %391 = vmatpush1.bf16.msra.mxu0 0
        %392 = vmatprep.subr.bf16.mxu0 0
        %393 = vmatpush1.bf16.msra.mxu0 0
        %394 = vmatprep.subr.bf16.mxu0 0
        %395 = vmatpush1.bf16.msra.mxu0 0
        %396 = vmatprep.subr.bf16.mxu0 0
        %397 = vmatpush1.bf16.msra.mxu0 0
        %398 = vmatprep.subr.bf16.mxu0 0
        %399 = vmatpush1.bf16.msra.mxu0 0
        %400 = vmatprep.subr.bf16.mxu0 0
        %401 = vmatpush1.bf16.msra.mxu0 0
        %402 = vmatprep.subr.bf16.mxu0 0
        %403 = vmatpush1.bf16.msra.mxu0 0
        %404 = vmatprep.subr.bf16.mxu0 0
        %405 = vmatpush1.bf16.msra.mxu0 0
        %406 = vmatprep.subr.bf16.mxu0 0
        %407 = vmatpush1.bf16.msra.mxu0 0
        %408 = vmatprep.subr.bf16.mxu0 0
        %409 = vmatpush1.bf16.msra.mxu0 0
        %410 = vmatprep.subr.bf16.mxu0 0
        %411 = vmatpush1.bf16.msra.mxu0 0
        %412 = vmatprep.mubr.bf16.mxu0 0
        %413 = vmatmul.mubr.bf16.gmra.mrb[0].mxu0 %v378
        %v414 = vpop.f32.mrb[0].mxu0
        %v415 = vadd.f32 %v350, %v414
        %v416 = vpop.f32.mrb[0].mxu0
        %v417 = vpop.f32.mrb[0].mxu0
        %v418 = vadd.f32 %v350, %v417
        %v419 = vpop.f32.mrb[0].mxu0
        %420 = vdwg.mxu0
        %vm421 = vcmask 261120
        %422 = vst.msk [vmem:[%s218] sm:$0xff] %vm421, %v415
        %423 = vst.msk [vmem:[%s218 + $0x8] sm:$0xff] %vm421, %v418
        %s424 = sand.u32 %s137, 1
        %s425 = scalar_lea.sflag [#allocation3], %s424
        %s426 = sand.u32 %s137, 1
        %s427 = smul.addr %s426, 16
        %s428 = scalar_lea.vmem [#allocation2], %s427
        // Predicated region
        $region41: #{tpu_custom_call.1} parent=39 // pred_check
          %p429 = pneg %p147
        $region42: #{tpu_custom_call.1} parent=39 // pred_check_branch
          %431 = sbr.rel (%p429) target = $region44
        $region43: #{tpu_custom_call.1} parent=39 // pred_region
          %s432 = smul.u32 2, %s19
          %s434 = ssub.s32 256, 256
          %435 = vsyncadd %s425, %s434
          %s436 = smul.addr %s432, 128
          %s437 = scalar_lea.hbm %s5, %s436
          %s438 = sshll.u32 %s428, 4
          %s439 = int_to_ptr.vmem [resolvable:$true] %s438
          %444 = dma.vmem_to_hbm [thread:$0]  %s439, 256, %s437, %s425, 128, 128, 8
        $region44: #{tpu_custom_call.1} parent=39 // pred_fallthru
          _
      $region40: #{tpu_custom_call.1} parent=5 // pred_fallthru
        _
      %p445 = scmp.le.s32.totalorder 2, %s14
      // Predicated region
      $region45: #{tpu_custom_call.1} parent=5 // pred_check
        %p446 = pneg %p445
      $region46: #{tpu_custom_call.1} parent=5 // pred_check_branch
        %448 = sbr.rel (%p446) target = $region48
      $region47: #{tpu_custom_call.1} parent=5 // pred_region
        %s449 = ssub.s32 %s14, 2
        // Predicated region
        $region49: #{tpu_custom_call.1} parent=47 // pred_check
          %p450 = pneg %p153
        $region50: #{tpu_custom_call.1} parent=47 // pred_check_branch
          %452 = sbr.rel (%p450) target = $region52
        $region51: #{tpu_custom_call.1} parent=47 // pred_region
          %s453 = sand.u32 %s138, 1
          %s454 = scalar_lea.sflag [#allocation3], %s453
          %s455 = sand.u32 %s138, 1
          %s456 = smul.addr %s455, 16
          %s457 = scalar_lea.vmem [#allocation2], %s456
          %458 = dma.done %s454, 256
        $region52: #{tpu_custom_call.1} parent=47 // pred_fallthru
          _
      $region48: #{tpu_custom_call.1} parent=5 // pred_fallthru
        _
    $region6: #{tpu_custom_call.1} parent=1 // loop_footer
      %s18 = sadd.s32 1, %s14
    $region7: #{tpu_custom_call.1} parent=1 // loop_footer_branch
      %13 = sbr.rel target = $region3
    $region8: #{tpu_custom_call.1} parent=1 // loop_exit
      _
    %459 = vsyncpa [#allocation3], 1
    %s460 = scalar_lea.sflag [#allocation3], 1
    %461 = vsyncpa %s460, 1

</llo_original>
